<compile_context>
chip_gen: v5e
topology: v5e:2x2
jax: 0.10.0
libtpu: 0.0.40
codegen_flags: <defaults>
</compile_context>

<pallas_src>
import functools

import jax
import jax.numpy as jnp
from jax import lax
from jax.experimental import pallas as pl
from jax.experimental.pallas import tpu as pltpu


def _discriminator_kernel(ni_ref, ri_ref, nni_ref, node_tbl_ref, rel_tbl_ref,
                          out_ref, *, num_relations):
    ni = ni_ref[...]               # [TB, 1] int32  node indices
    ri = ri_ref[...]               # [TB, 1] int32  relation indices
    nni = nni_ref[...]             # [TB, 1] int32  neighbor indices
    node_tbl = node_tbl_ref[...]   # [N, D]  f32    resident node-embedding table

    tb = ni.shape[0]
    n_nodes = node_tbl.shape[0]

    # Gather e_u / e_v rows for the whole tile via one-hot matmuls (MXU).
    node_iota = lax.broadcasted_iota(jnp.int32, (tb, n_nodes), 1)
    eu = jnp.dot((ni == node_iota).astype(jnp.float32), node_tbl,
                 preferred_element_type=jnp.float32)          # [TB, D]
    ev = jnp.dot((nni == node_iota).astype(jnp.float32), node_tbl,
                 preferred_element_type=jnp.float32)          # [TB, D]

    # temp[b] = e_u[b] @ M_{r_b}: relation-grouped dense matmuls + select.
    temp = jnp.zeros_like(eu)
    for r in range(num_relations):                            # R is tiny; unrolled
        temp_r = jnp.dot(eu, rel_tbl_ref[r],
                         preferred_element_type=jnp.float32)  # [TB, D]
        temp = jnp.where(ri == r, temp_r, temp)

    # score = sum_d temp * e_v ; prob = sigmoid(score)
    score = jnp.sum(temp * ev, axis=-1, keepdims=True)        # [TB, 1]
    out_ref[...] = pl.reciprocal(1.0 + jnp.exp(-score), approx=False)


def discriminator_forward(node_embed_tbl, relation_embed_tbl,
                          node_idx, relation_idx, node_neighbor_idx,
                          node_embed_size, tile_b=256):
    """Fused forward: in-VMEM gathers + relation-grouped matmuls + sigmoid."""
    D = int(node_embed_size)
    N = node_embed_tbl.shape[0]
    R = relation_embed_tbl.shape[0]
    B = node_idx.shape[0]

    # One-time reshape of the (tiny) relation table; it stays resident in VMEM.
    rel_tbl = relation_embed_tbl.reshape(R, D, D).astype(jnp.float32)
    node_tbl = node_embed_tbl.astype(jnp.float32)

    # Tile size: multiple of 8 (sublane), capped at 256 elements per step.
    TB = min(int(tile_b), ((B + 7) // 8) * 8)
    TB = max(8, (TB // 8) * 8)
    B_pad = ((B + TB - 1) // TB) * TB
    num_tiles = B_pad // TB

    def prep(idx):
        idx = idx.astype(jnp.int32).reshape(-1, 1)
        if B_pad != B:
            idx = jnp.pad(idx, ((0, B_pad - B), (0, 0)))      # pad with valid index 0
        return idx

    ni = prep(node_idx)
    ri = prep(relation_idx)
    nni = prep(node_neighbor_idx)

    kernel = functools.partial(_discriminator_kernel, num_relations=R)

    grid_spec = pltpu.PrefetchScalarGridSpec(
        num_scalar_prefetch=0,
        grid=(num_tiles,),
        in_specs=[
            pl.BlockSpec((TB, 1), lambda i: (i, 0)),          # node indices
            pl.BlockSpec((TB, 1), lambda i: (i, 0)),          # relation indices
            pl.BlockSpec((TB, 1), lambda i: (i, 0)),          # neighbor indices
            pl.BlockSpec((N, D), lambda i: (0, 0)),           # resident node table
            pl.BlockSpec((R, D, D), lambda i: (0, 0, 0)),     # resident relation table
        ],
        out_specs=pl.BlockSpec((TB, 1), lambda i: (i, 0)),
    )

    prob = pl.pallas_call(
        kernel,
        out_shape=jax.ShapeDtypeStruct((B_pad, 1), jnp.float32),
        grid_spec=grid_spec,
        compiler_params=pltpu.CompilerParams(
            dimension_semantics=("parallel",),                # v7x: split batch tiles across TCs
        ),
    )(ni, ri, nni, node_tbl, rel_tbl)

    return prob[:B]


def _reference_forward(node_embed_tbl, relation_embed_tbl,
                       node_idx, relation_idx, node_neighbor_idx, D):
    node_e = jnp.take(node_embed_tbl, node_idx, axis=0).reshape((-1, 1, D))
    rel_m = jnp.take(relation_embed_tbl, relation_idx, axis=0).reshape((-1, D, D))
    neigh_e = jnp.take(node_embed_tbl, node_neighbor_idx, axis=0).reshape((-1, 1, D))
    temp = jnp.matmul(node_e, rel_m)
    score = jnp.sum(temp * neigh_e, axis=2)
    return jax.nn.sigmoid(score)


if __name__ == "__main__":
    # Synthetic, deterministic parameters (mirrors args.pretrain_embed /
    # nn.Embedding(relation_size, D*D) + xavier_uniform).
    node_size = 64          # number of nodes in the graph
    relation_size = 4       # args.relation_size
    D = 32                  # args.node_embed_size
    B = 8                   # batch of (node, relation, neighbor) triples

    key = jax.random.PRNGKey(0)
    k_node, k_rel, k_ni, k_ri, k_nn = jax.random.split(key, 5)

    # node embedding table [node_size, D]  (pretrained embed stand-in)
    node_embed_tbl = jax.random.normal(k_node, (node_size, D), dtype=jnp.float32) * 0.1

    # relation embedding table [relation_size, D*D], xavier-uniform-ish init
    fan_in, fan_out = relation_size, D * D
    limit = (6.0 / (fan_in + fan_out)) ** 0.5
    relation_embed_tbl = jax.random.uniform(
        k_rel, (relation_size, D * D), dtype=jnp.float32, minval=-limit, maxval=limit)

    # index inputs
    node_idx = jax.random.randint(k_ni, (B,), 0, node_size, dtype=jnp.int32)
    relation_idx = jax.random.randint(k_ri, (B,), 0, relation_size, dtype=jnp.int32)
    node_neighbor_idx = jax.random.randint(k_nn, (B,), 0, node_size, dtype=jnp.int32)

    prob = discriminator_forward(node_embed_tbl, relation_embed_tbl,
                                 node_idx, relation_idx, node_neighbor_idx, D)
    prob = jax.block_until_ready(prob)

    ref = _reference_forward(node_embed_tbl, relation_embed_tbl,
                             node_idx, relation_idx, node_neighbor_idx, D)
    ref = jax.block_until_ready(ref)

    assert prob.shape == (B, 1), prob.shape
    assert jnp.allclose(prob, ref, atol=1e-5, rtol=1e-5), (prob, ref)
    print("KERNEL_OK")
</pallas_src>

<mosaic_0001>
module attributes {stable_mosaic.version = 11 : i64} {
  func.func @_discriminator_kernel(%arg0: i32, %arg1: memref<8x1xi32, #tpu.memory_space<vmem>>, %arg2: memref<8x1xi32, #tpu.memory_space<vmem>>, %arg3: memref<8x1xi32, #tpu.memory_space<vmem>>, %arg4: memref<64x32xf32, #tpu.memory_space<vmem>>, %arg5: memref<4x32x32xf32, #tpu.memory_space<vmem>>, %arg6: memref<8x1xf32, #tpu.memory_space<vmem>>) attributes {dimension_semantics = [#tpu.dimension_semantics<parallel>], iteration_bounds = array<i64: 1>, scalar_prefetch = 0 : i64, scratch_operands = 0 : i64, tpu.core_type = #tpu.core_type<tc>, window_params = [{transform_indices = @transform_0, window_bounds = array<i64: 8, 1>}, {transform_indices = @transform_1, window_bounds = array<i64: 8, 1>}, {transform_indices = @transform_2, window_bounds = array<i64: 8, 1>}, {pipeline_mode = #tpu.pipeline_mode<synchronous>, transform_indices = @transform_3, window_bounds = array<i64: 64, 32>}, {pipeline_mode = #tpu.pipeline_mode<synchronous>, transform_indices = @transform_4, window_bounds = array<i64: 4, 32, 32>}, {transform_indices = @transform_5, window_bounds = array<i64: 8, 1>}]} {
    %c0 = arith.constant 0 : index
    %c0_0 = arith.constant 0 : index
    %0 = vector.load %arg1[%c0, %c0_0] : memref<8x1xi32, #tpu.memory_space<vmem>>, vector<8x1xi32>
    %c0_1 = arith.constant 0 : index
    %c0_2 = arith.constant 0 : index
    %1 = vector.load %arg2[%c0_1, %c0_2] : memref<8x1xi32, #tpu.memory_space<vmem>>, vector<8x1xi32>
    %c0_3 = arith.constant 0 : index
    %c0_4 = arith.constant 0 : index
    %2 = vector.load %arg3[%c0_3, %c0_4] : memref<8x1xi32, #tpu.memory_space<vmem>>, vector<8x1xi32>
    %c0_5 = arith.constant 0 : index
    %c0_6 = arith.constant 0 : index
    %3 = vector.load %arg4[%c0_5, %c0_6] : memref<64x32xf32, #tpu.memory_space<vmem>>, vector<64x32xf32>
    %4 = tpu.iota {dimensions = array<i32: 1>} : vector<8x64xi32>
    %5 = vector.broadcast %0 : vector<8x1xi32> to vector<8x64xi32>
    %6 = arith.cmpi eq, %5, %4 : vector<8x64xi32>
    %7 = arith.extui %6 : vector<8x64xi1> to vector<8x64xi32>
    %8 = arith.sitofp %7 : vector<8x64xi32> to vector<8x64xf32>
    %cst = arith.constant dense<0.000000e+00> : vector<8x32xf32>
    %9 = tpu.matmul %8, %3, %cst {dimension_numbers = #tpu.dot_dimension_numbers<[1], [0], [0], [1], [0, 0, 1, 1], [], []>} : vector<8x64xf32>, vector<64x32xf32>, vector<8x32xf32> -> vector<8x32xf32>
    %10 = vector.broadcast %2 : vector<8x1xi32> to vector<8x64xi32>
    %11 = arith.cmpi eq, %10, %4 : vector<8x64xi32>
    %12 = arith.extui %11 : vector<8x64xi1> to vector<8x64xi32>
    %13 = arith.sitofp %12 : vector<8x64xi32> to vector<8x64xf32>
    %cst_7 = arith.constant dense<0.000000e+00> : vector<8x32xf32>
    %14 = tpu.matmul %13, %3, %cst_7 {dimension_numbers = #tpu.dot_dimension_numbers<[1], [0], [0], [1], [0, 0, 1, 1], [], []>} : vector<8x64xf32>, vector<64x32xf32>, vector<8x32xf32> -> vector<8x32xf32>
    %cst_8 = arith.constant 0.000000e+00 : f32
    %15 = vector.broadcast %cst_8 : f32 to vector<8x32xf32>
    %c0_9 = arith.constant 0 : index
    %c0_10 = arith.constant 0 : index
    %c0_11 = arith.constant 0 : index
    %16 = vector.load %arg5[%c0_9, %c0_10, %c0_11] : memref<4x32x32xf32, #tpu.memory_space<vmem>>, vector<1x32x32xf32>
    %17 = vector.shape_cast %16 : vector<1x32x32xf32> to vector<32x32xf32>
    %cst_12 = arith.constant dense<0.000000e+00> : vector<8x32xf32>
    %18 = tpu.matmul %9, %17, %cst_12 {dimension_numbers = #tpu.dot_dimension_numbers<[1], [0], [0], [1], [0, 0, 1, 1], [], []>} : vector<8x32xf32>, vector<32x32xf32>, vector<8x32xf32> -> vector<8x32xf32>
    %c0_i32 = arith.constant 0 : i32
    %19 = vector.broadcast %c0_i32 : i32 to vector<8x1xi32>
    %20 = arith.cmpi eq, %1, %19 : vector<8x1xi32>
    %21 = vector.shape_cast %20 : vector<8x1xi1> to vector<8x1xi1>
    %22 = vector.broadcast %21 : vector<8x1xi1> to vector<8x32xi1>
    %23 = arith.select %22, %18, %15 : vector<8x32xi1>, vector<8x32xf32>
    %c1 = arith.constant 1 : index
    %c0_13 = arith.constant 0 : index
    %c0_14 = arith.constant 0 : index
    %24 = vector.load %arg5[%c1, %c0_13, %c0_14] : memref<4x32x32xf32, #tpu.memory_space<vmem>>, vector<1x32x32xf32>
    %25 = vector.shape_cast %24 : vector<1x32x32xf32> to vector<32x32xf32>
    %cst_15 = arith.constant dense<0.000000e+00> : vector<8x32xf32>
    %26 = tpu.matmul %9, %25, %cst_15 {dimension_numbers = #tpu.dot_dimension_numbers<[1], [0], [0], [1], [0, 0, 1, 1], [], []>} : vector<8x32xf32>, vector<32x32xf32>, vector<8x32xf32> -> vector<8x32xf32>
    %c1_i32 = arith.constant 1 : i32
    %27 = vector.broadcast %c1_i32 : i32 to vector<8x1xi32>
    %28 = arith.cmpi eq, %1, %27 : vector<8x1xi32>
    %29 = vector.shape_cast %28 : vector<8x1xi1> to vector<8x1xi1>
    %30 = vector.broadcast %29 : vector<8x1xi1> to vector<8x32xi1>
    %31 = arith.select %30, %26, %23 : vector<8x32xi1>, vector<8x32xf32>
    %c2 = arith.constant 2 : index
    %c0_16 = arith.constant 0 : index
    %c0_17 = arith.constant 0 : index
    %32 = vector.load %arg5[%c2, %c0_16, %c0_17] : memref<4x32x32xf32, #tpu.memory_space<vmem>>, vector<1x32x32xf32>
    %33 = vector.shape_cast %32 : vector<1x32x32xf32> to vector<32x32xf32>
    %cst_18 = arith.constant dense<0.000000e+00> : vector<8x32xf32>
    %34 = tpu.matmul %9, %33, %cst_18 {dimension_numbers = #tpu.dot_dimension_numbers<[1], [0], [0], [1], [0, 0, 1, 1], [], []>} : vector<8x32xf32>, vector<32x32xf32>, vector<8x32xf32> -> vector<8x32xf32>
    %c2_i32 = arith.constant 2 : i32
    %35 = vector.broadcast %c2_i32 : i32 to vector<8x1xi32>
    %36 = arith.cmpi eq, %1, %35 : vector<8x1xi32>
    %37 = vector.shape_cast %36 : vector<8x1xi1> to vector<8x1xi1>
    %38 = vector.broadcast %37 : vector<8x1xi1> to vector<8x32xi1>
    %39 = arith.select %38, %34, %31 : vector<8x32xi1>, vector<8x32xf32>
    %c3 = arith.constant 3 : index
    %c0_19 = arith.constant 0 : index
    %c0_20 = arith.constant 0 : index
    %40 = vector.load %arg5[%c3, %c0_19, %c0_20] : memref<4x32x32xf32, #tpu.memory_space<vmem>>, vector<1x32x32xf32>
    %41 = vector.shape_cast %40 : vector<1x32x32xf32> to vector<32x32xf32>
    %cst_21 = arith.constant dense<0.000000e+00> : vector<8x32xf32>
    %42 = tpu.matmul %9, %41, %cst_21 {dimension_numbers = #tpu.dot_dimension_numbers<[1], [0], [0], [1], [0, 0, 1, 1], [], []>} : vector<8x32xf32>, vector<32x32xf32>, vector<8x32xf32> -> vector<8x32xf32>
    %c3_i32 = arith.constant 3 : i32
    %43 = vector.broadcast %c3_i32 : i32 to vector<8x1xi32>
    %44 = arith.cmpi eq, %1, %43 : vector<8x1xi32>
    %45 = vector.shape_cast %44 : vector<8x1xi1> to vector<8x1xi1>
    %46 = vector.broadcast %45 : vector<8x1xi1> to vector<8x32xi1>
    %47 = arith.select %46, %42, %39 : vector<8x32xi1>, vector<8x32xf32>
    %48 = arith.mulf %47, %14 : vector<8x32xf32>
    %cst_22 = arith.constant dense<0.000000e+00> : vector<8xf32>
    %49 = vector.multi_reduction <add>, %48, %cst_22 [1] : vector<8x32xf32> to vector<8xf32>
    %50 = vector.shape_cast %49 : vector<8xf32> to vector<8x1xf32>
    %cst_23 = arith.constant 0.000000e+00 : f32
    %51 = vector.broadcast %cst_23 : f32 to vector<8x1xf32>
    %52 = arith.subf %51, %50 : vector<8x1xf32>
    %53 = math.exp %52 : vector<8x1xf32>
    %cst_24 = arith.constant 1.000000e+00 : f32
    %54 = vector.broadcast %cst_24 : f32 to vector<8x1xf32>
    %55 = arith.addf %54, %53 : vector<8x1xf32>
    %56 = tpu.reciprocal %55 : vector<8x1xf32> -> vector<8x1xf32>
    %c0_25 = arith.constant 0 : index
    %c0_26 = arith.constant 0 : index
    %57 = vector.load %arg6[%c0_25, %c0_26] : memref<8x1xf32, #tpu.memory_space<vmem>>, vector<8x1xf32>
    tpu.vector_store %arg6[%c0_25, %c0_26], %56 {strides = array<i32>} : memref<8x1xf32, #tpu.memory_space<vmem>>, vector<8x1xf32>,
    return
  }
  func.func @transform_0(%arg0: i32) -> (i32, i32) {
    %c0_i32 = arith.constant 0 : i32
    %c0_i32_0 = arith.constant 0 : i32
    return %arg0, %c0_i32 : i32, i32
  }
  func.func @transform_1(%arg0: i32) -> (i32, i32) {
    %c0_i32 = arith.constant 0 : i32
    %c0_i32_0 = arith.constant 0 : i32
    return %arg0, %c0_i32 : i32, i32
  }
  func.func @transform_2(%arg0: i32) -> (i32, i32) {
    %c0_i32 = arith.constant 0 : i32
    %c0_i32_0 = arith.constant 0 : i32
    return %arg0, %c0_i32 : i32, i32
  }
  func.func @transform_3(%arg0: i32) -> (i32, i32) {
    %c0_i32 = arith.constant 0 : i32
    %c0_i32_0 = arith.constant 0 : i32
    %c0_i32_1 = arith.constant 0 : i32
    return %c0_i32, %c0_i32_0 : i32, i32
  }
  func.func @transform_4(%arg0: i32) -> (i32, i32, i32) {
    %c0_i32 = arith.constant 0 : i32
    %c0_i32_0 = arith.constant 0 : i32
    %c0_i32_1 = arith.constant 0 : i32
    %c0_i32_2 = arith.constant 0 : i32
    return %c0_i32, %c0_i32_0, %c0_i32_1 : i32, i32, i32
  }
  func.func @transform_5(%arg0: i32) -> (i32, i32) {
    %c0_i32 = arith.constant 0 : i32
    %c0_i32_0 = arith.constant 0 : i32
    return %arg0, %c0_i32 : i32, i32
  }
}

</mosaic_0001>

<llo_original>
// kernel: tpu_custom_call.1
$region0: #{tpu_custom_call.1}
  #allocation0 [shape = 'u32[]', space=smem, size = 0x4, offset = 0x4, fixed_abs, tag = 'smem constant byte address 0x4 - core index']
  #allocation1 [shape = 'u32[72,128]{1,0:T(1,128)}', space=vmem, size = 0x9000, scoped, tag = 'internal scratch']
  %s0 = inlined_call_operand.vmem [shape: s32[8,1], index: 0, kind: input, shape index: {}]
  %s1 = inlined_call_operand.vmem [shape: s32[8,1], index: 1, kind: input, shape index: {}]
  %s2 = inlined_call_operand.vmem [shape: s32[8,1], index: 2, kind: input, shape index: {}]
  %s3 = inlined_call_operand.vmem [shape: f32[64,32], index: 3, kind: input, shape index: {}]
  %s4 = inlined_call_operand.hbm [shape: f32[4,32,32], index: 4, kind: input, shape index: {}]
  %s5 = inlined_call_operand.vmem [shape: f32[8,1], index: 5, kind: output, shape index: {}]
  %s6 = sld [smem:[#allocation0]]
  $region34: #{tpu_custom_call.1} parent=0
    _
  %s8 = ssub.s32 1, %s6
  %s9 = scalar_select 0, %s8, %s6
  $region1: #{tpu_custom_call.1} parent=0
    #allocation2 [shape = 'u8[65536]{0}', space=vmem, size = 0x10000, scoped, tag = 'input window, operand 4, single buffered']
    #allocation3 [shape = 's32[1]{0}', space=sflag, size = 0x4, scoped, tag = 'scoped memory for tpu_custom_call.1']
    %10 = vsyncpa [#allocation3], 0
    // Predicated region
    $region2: #{tpu_custom_call.1} parent=1 // pred_check
      _
    $region3: #{tpu_custom_call.1} parent=1 // pred_check_branch
      %12 = sbr.rel (0) target = $region5
    $region4: #{tpu_custom_call.1} parent=1 // pred_region
      _
    $region5: #{tpu_custom_call.1} parent=1 // pred_fallthru
      _
    // Predicated region
    $region6: #{tpu_custom_call.1} parent=1 // pred_check
      _
    $region7: #{tpu_custom_call.1} parent=1 // pred_check_branch
      %14 = sbr.rel (0) target = $region9
    $region8: #{tpu_custom_call.1} parent=1 // pred_region
      _
    $region9: #{tpu_custom_call.1} parent=1 // pred_fallthru
      _
    // Predicated region
    $region10: #{tpu_custom_call.1} parent=1 // pred_check
      _
    $region11: #{tpu_custom_call.1} parent=1 // pred_check_branch
      %16 = sbr.rel (0) target = $region13
    $region12: #{tpu_custom_call.1} parent=1 // pred_region
      _
    $region13: #{tpu_custom_call.1} parent=1 // pred_fallthru
      _
    // Predicated region
    $region14: #{tpu_custom_call.1} parent=1 // pred_check
      _
    $region15: #{tpu_custom_call.1} parent=1 // pred_check_branch
      %18 = sbr.rel (0) target = $region17
    $region16: #{tpu_custom_call.1} parent=1 // pred_region
      _
    $region17: #{tpu_custom_call.1} parent=1 // pred_fallthru
      _
    // Predicated region
    $region18: #{tpu_custom_call.1} parent=1 // pred_check
      _
    $region19: #{tpu_custom_call.1} parent=1 // pred_check_branch
      %20 = sbr.rel (0) target = $region21
    $region20: #{tpu_custom_call.1} parent=1 // pred_region
      %22 = vsyncadd [#allocation3], 0
      %s23 = sshll.u32 %s4, 4
      %s24 = int_to_ptr.hbm [resolvable:$true] %s23
      %s25 = sshll.u32 [#allocation2], 4
      %s26 = int_to_ptr.vmem [resolvable:$true] %s25
      %31 = dma.hbm_to_vmem [thread:$0]  %s24, 2048, %s26, [#allocation3], 128, 128, 8
    $region21: #{tpu_custom_call.1} parent=1 // pred_fallthru
      _
    // Predicated region
    $region22: #{tpu_custom_call.1} parent=1 // pred_check
      _
    $region23: #{tpu_custom_call.1} parent=1 // pred_check_branch
      %33 = sbr.rel (0) target = $region25
    $region24: #{tpu_custom_call.1} parent=1 // pred_region
      %35 = dma.done [#allocation3], 2048
    $region25: #{tpu_custom_call.1} parent=1 // pred_fallthru
      _
    %v36 = vld [vmem:[%s0] sm:$0xff]
    %v37 = vld [vmem:[%s1] sm:$0xff]
    %v38 = vld [vmem:[%s2] sm:$0xff]
    %v39 = vld [vmem:[%s3] sm:$0xff]
    %v40 = vld [vmem:[%s3 + $0x8] sm:$0xff]
    %v41 = vld [vmem:[%s3 + $0x10] sm:$0xff]
    %v42 = vld [vmem:[%s3 + $0x18] sm:$0xff]
    %v43 = vld [vmem:[%s3 + $0x20] sm:$0xff]
    %v44 = vld [vmem:[%s3 + $0x28] sm:$0xff]
    %v45 = vld [vmem:[%s3 + $0x30] sm:$0xff]
    %v46 = vld [vmem:[%s3 + $0x38] sm:$0xff]
    %v47 = vlaneseq
    %v48 = vand.u32 %v47, 127
    %49 = vset.pattern.permute.xlu0 0
    %50 = vperm.xlu0 %49, %v36
    %v51 = vpop.permute.xlu0 %50
    %vm52 = vcmp.eq.s32.totalorder %v51, %v48
    %v53 = vsel %vm52, 1, 0
    %v54 = vcvt.s32.f32 %v53
    %vm55 = vcmask 523264
    %v57 = vsel %vm55, %v54, 0
    %59 = vmatpush.msra.mxu0 0.0
    %60 = vmatpush.msra.mxu0 0.0
    %61 = vmatpush.msra.mxu0 0.0
    %62 = vmatpush.msra.mxu0 0.0
    %63 = vmatpush.msra.mxu0 0.0
    %64 = vmatpush.msra.mxu0 0.0
    %65 = vmatpush.msra.mxu0 0.0
    %66 = vmatpush.msra.mxu0 0.0
    %67 = vmatpush.msra.mxu0 %v46
    %68 = vmatpush.msra.mxu0 %v45
    %69 = vmatpush.msra.mxu0 %v44
    %70 = vmatpush.msra.mxu0 %v43
    %71 = vmatpush.msra.mxu0 %v42
    %72 = vmatpush.msra.mxu0 %v41
    %73 = vmatpush.msra.mxu0 %v40
    %74 = vmatpush.msra.mxu0 %v39
    %75 = vmatmul.f32.gmra.mxu0 %v57
    %v76 = vpop.f32.mrf.mxu0
    %v77 = vadd.f32 0.0, %v76
    %78 = vdwg.mxu0
    %79 = vset.pattern.permute.xlu0 0
    %80 = vperm.xlu0 %79, %v38
    %v81 = vpop.permute.xlu0 %80
    %vm82 = vcmp.eq.s32.totalorder %v81, %v48
    %v83 = vsel %vm82, 1, 0
    %v84 = vcvt.s32.f32 %v83
    %v86 = vsel %vm55, %v84, 0
    %88 = vmatpush.msra.mxu0 0.0
    %89 = vmatpush.msra.mxu0 0.0
    %90 = vmatpush.msra.mxu0 0.0
    %91 = vmatpush.msra.mxu0 0.0
    %92 = vmatpush.msra.mxu0 0.0
    %93 = vmatpush.msra.mxu0 0.0
    %94 = vmatpush.msra.mxu0 0.0
    %95 = vmatpush.msra.mxu0 0.0
    %96 = vmatpush.msra.mxu0 %v46
    %97 = vmatpush.msra.mxu0 %v45
    %98 = vmatpush.msra.mxu0 %v44
    %99 = vmatpush.msra.mxu0 %v43
    %100 = vmatpush.msra.mxu0 %v42
    %101 = vmatpush.msra.mxu0 %v41
    %102 = vmatpush.msra.mxu0 %v40
    %103 = vmatpush.msra.mxu0 %v39
    %104 = vmatmul.f32.gmra.mxu0 %v86
    %v105 = vpop.f32.mrf.mxu0
    %v106 = vadd.f32 0.0, %v105
    %107 = vdwg.mxu0
    %v108 = vld [vmem:[#allocation2] sm:$0xff]
    %v109 = vld [vmem:[#allocation2 + $0x8] sm:$0xff]
    %v110 = vld [vmem:[#allocation2 + $0x10] sm:$0xff]
    %v111 = vld [vmem:[#allocation2 + $0x18] sm:$0xff]
    %vm112 = vcmask 261120
    %v114 = vsel %vm112, %v77, 0
    %116 = vmatpush.msra.mxu0 0.0
    %117 = vmatpush.msra.mxu0 0.0
    %118 = vmatpush.msra.mxu0 0.0
    %119 = vmatpush.msra.mxu0 0.0
    %120 = vmatpush.msra.mxu0 0.0
    %121 = vmatpush.msra.mxu0 0.0
    %122 = vmatpush.msra.mxu0 0.0
    %123 = vmatpush.msra.mxu0 0.0
    %124 = vmatpush.msra.mxu0 0.0
    %125 = vmatpush.msra.mxu0 0.0
    %126 = vmatpush.msra.mxu0 0.0
    %127 = vmatpush.msra.mxu0 0.0
    %128 = vmatpush.msra.mxu0 %v111
    %129 = vmatpush.msra.mxu0 %v110
    %130 = vmatpush.msra.mxu0 %v109
    %131 = vmatpush.msra.mxu0 %v108
    %132 = vmatmul.f32.gmra.mxu0 %v114
    %v133 = vpop.f32.mrf.mxu0
    %v134 = vadd.f32 0.0, %v133
    %135 = vdwg.mxu0
    %vm136 = vcmp.eq.s32.totalorder %v37, 0
    %v137 = vsel %vm136, 1, 0
    %138 = vset.pattern.permute.xlu0 0
    %139 = vperm.xlu0 %138, %v137
    %v140 = vpop.permute.xlu0 %139
    %vm141 = vcmp.eq.s32.totalorder %v140, 1
    %v142 = vsel %vm141, %v134, 0.0
    %s143 = scalar_lea.vmem [#allocation2], 32
    %v144 = vld [vmem:[%s143] sm:$0xff]
    %v145 = vld [vmem:[%s143 + $0x8] sm:$0xff]
    %v146 = vld [vmem:[%s143 + $0x10] sm:$0xff]
    %v147 = vld [vmem:[%s143 + $0x18] sm:$0xff]
    %148 = vmatpush.msra.mxu0 0.0
    %149 = vmatpush.msra.mxu0 0.0
    %150 = vmatpush.msra.mxu0 0.0
    %151 = vmatpush.msra.mxu0 0.0
    %152 = vmatpush.msra.mxu0 0.0
    %153 = vmatpush.msra.mxu0 0.0
    %154 = vmatpush.msra.mxu0 0.0
    %155 = vmatpush.msra.mxu0 0.0
    %156 = vmatpush.msra.mxu0 0.0
    %157 = vmatpush.msra.mxu0 0.0
    %158 = vmatpush.msra.mxu0 0.0
    %159 = vmatpush.msra.mxu0 0.0
    %160 = vmatpush.msra.mxu0 %v147
    %161 = vmatpush.msra.mxu0 %v146
    %162 = vmatpush.msra.mxu0 %v145
    %163 = vmatpush.msra.mxu0 %v144
    %164 = vmatmul.f32.gmra.mxu0 %v114
    %v165 = vpop.f32.mrf.mxu0
    %v166 = vadd.f32 0.0, %v165
    %167 = vdwg.mxu0
    %vm168 = vcmp.eq.s32.totalorder %v37, 1
    %v169 = vsel %vm168, 1, 0
    %170 = vset.pattern.permute.xlu0 0
    %171 = vperm.xlu0 %170, %v169
    %v172 = vpop.permute.xlu0 %171
    %vm173 = vcmp.eq.s32.totalorder %v172, 1
    %v174 = vsel %vm173, %v166, %v142
    %s175 = scalar_lea.vmem [#allocation2], 64
    %v176 = vld [vmem:[%s175] sm:$0xff]
    %v177 = vld [vmem:[%s175 + $0x8] sm:$0xff]
    %v178 = vld [vmem:[%s175 + $0x10] sm:$0xff]
    %v179 = vld [vmem:[%s175 + $0x18] sm:$0xff]
    %180 = vmatpush.msra.mxu0 0.0
    %181 = vmatpush.msra.mxu0 0.0
    %182 = vmatpush.msra.mxu0 0.0
    %183 = vmatpush.msra.mxu0 0.0
    %184 = vmatpush.msra.mxu0 0.0
    %185 = vmatpush.msra.mxu0 0.0
    %186 = vmatpush.msra.mxu0 0.0
    %187 = vmatpush.msra.mxu0 0.0
    %188 = vmatpush.msra.mxu0 0.0
    %189 = vmatpush.msra.mxu0 0.0
    %190 = vmatpush.msra.mxu0 0.0
    %191 = vmatpush.msra.mxu0 0.0
    %192 = vmatpush.msra.mxu0 %v179
    %193 = vmatpush.msra.mxu0 %v178
    %194 = vmatpush.msra.mxu0 %v177
    %195 = vmatpush.msra.mxu0 %v176
    %196 = vmatmul.f32.gmra.mxu0 %v114
    %v197 = vpop.f32.mrf.mxu0
    %v198 = vadd.f32 0.0, %v197
    %199 = vdwg.mxu0
    %vm200 = vcmp.eq.s32.totalorder %v37, 2
    %v201 = vsel %vm200, 1, 0
    %202 = vset.pattern.permute.xlu0 0
    %203 = vperm.xlu0 %202, %v201
    %v204 = vpop.permute.xlu0 %203
    %vm205 = vcmp.eq.s32.totalorder %v204, 1
    %v206 = vsel %vm205, %v198, %v174
    %s207 = scalar_lea.vmem [#allocation2], 96
    %v208 = vld [vmem:[%s207] sm:$0xff]
    %v209 = vld [vmem:[%s207 + $0x8] sm:$0xff]
    %v210 = vld [vmem:[%s207 + $0x10] sm:$0xff]
    %v211 = vld [vmem:[%s207 + $0x18] sm:$0xff]
    %212 = vmatpush.msra.mxu0 0.0
    %213 = vmatpush.msra.mxu0 0.0
    %214 = vmatpush.msra.mxu0 0.0
    %215 = vmatpush.msra.mxu0 0.0
    %216 = vmatpush.msra.mxu0 0.0
    %217 = vmatpush.msra.mxu0 0.0
    %218 = vmatpush.msra.mxu0 0.0
    %219 = vmatpush.msra.mxu0 0.0
    %220 = vmatpush.msra.mxu0 0.0
    %221 = vmatpush.msra.mxu0 0.0
    %222 = vmatpush.msra.mxu0 0.0
    %223 = vmatpush.msra.mxu0 0.0
    %224 = vmatpush.msra.mxu0 %v211
    %225 = vmatpush.msra.mxu0 %v210
    %226 = vmatpush.msra.mxu0 %v209
    %227 = vmatpush.msra.mxu0 %v208
    %228 = vmatmul.f32.gmra.mxu0 %v114
    %v229 = vpop.f32.mrf.mxu0
    %v230 = vadd.f32 0.0, %v229
    %231 = vdwg.mxu0
    %vm232 = vcmp.eq.s32.totalorder %v37, 3
    %v233 = vsel %vm232, 1, 0
    %234 = vset.pattern.permute.xlu0 0
    %235 = vperm.xlu0 %234, %v233
    %v236 = vpop.permute.xlu0 %235
    %vm237 = vcmp.eq.s32.totalorder %v236, 1
    %v238 = vsel %vm237, %v230, %v206
    %v239 = vmul.f32 %v238, %v106
    %v240 = vsel %vm112, %v239, 0.0
    %241 = vadd.xlane.f32.xlu0 %v240
    %v242 = vpop.xlane.xlu0 %241
    %v243 = vsub.f32 0.0, %v242
    %v244 = vmul.f32 %v243, 1.442695
    %v245 = vpow.pop %v244
    %v246 = vadd.f32 %v245, 1.0
    %v247 = vrcp.pop %v246
    %v248 = vmul.f32 %v246, %v247
    %v249 = vsub.f32 1.0, %v248
    %v250 = vmul.f32 %v247, %v249
    %v251 = vadd.f32 %v247, %v250
    %vm252 = vweird.f32 %v246
    %vm253 = vweird.f32 %v247
    %vm254 = vmor %vm252, %vm253
    %v255 = vsel %vm254, %v247, %v251
    %v256 = vand.u32 2147483647, %v246
    %vm257 = vcmp.eq.f32.partialorder %v256, 8.507059e+37
    %v258 = vand.u32 %v246, 2147483648
    %v259 = vor.u32 1.1754944e-38, %v258
    %v260 = vsel %vm257, %v259, %v255
    %vm261 = vcmask 7168
    %262 = vst.msk [vmem:[%s5] sm:$0xff] %vm261, %v260
    // Predicated region
    $region26: #{tpu_custom_call.1} parent=1 // pred_check
      _
    $region27: #{tpu_custom_call.1} parent=1 // pred_check_branch
      %264 = sbr.rel (0) target = $region29
    $region28: #{tpu_custom_call.1} parent=1 // pred_region
      _
    $region29: #{tpu_custom_call.1} parent=1 // pred_fallthru
      _
    // Predicated region
    $region30: #{tpu_custom_call.1} parent=1 // pred_check
      _
    $region31: #{tpu_custom_call.1} parent=1 // pred_check_branch
      %266 = sbr.rel (0) target = $region33
    $region32: #{tpu_custom_call.1} parent=1 // pred_region
      _
    $region33: #{tpu_custom_call.1} parent=1 // pred_fallthru
      _
    %267 = vsyncpa [#allocation3], 1

</llo_original>
